<compile_context>
chip_gen: v6e
topology: v6e:2x2x1
jax: 0.10.0
libtpu: 0.0.40
codegen_flags: <defaults>
</compile_context>

<pallas_src>
import jax
import jax.numpy as jnp
from jax.experimental import pallas as pl
from jax.experimental.pallas import tpu as pltpu


def _head_kernel(cls_ref, wt_ref, b_ref, out_ref):
    """CLS pooling (done by the BlockSpec) + 2-way linear head on the MXU.

    cls_ref : (TN, H) bf16 VMEM  CLS hidden states for this row tile
    wt_ref  : (H, 2)  bf16 VMEM  linear weight, pre-transposed (resident)
    b_ref   : (1, 2)  f32  VMEM  linear bias row (broadcast add)
    out_ref : (TN, 2) f32  VMEM  logits
    """
    out_ref[...] = (
        jnp.dot(cls_ref[...], wt_ref[...], preferred_element_type=jnp.float32)
        + b_ref[...]
    )


def _choose_row_tile(n, row_tile):
    """Row tile: as large as possible (amortize ~0.35us/grid-step) up to
    `row_tile`, but split into >= 2 blocks when N allows so the "parallel"
    grid axis can be sharded across both v7x TensorCores."""
    if n <= 16:
        return n                        # single block equal to the full dim
    target = pl.cdiv(n, 2)              # at least 2 blocks of work
    target = ((target + 7) // 8) * 8    # sublane-aligned
    tn = min(row_tile, target)
    return max(8, (tn // 8) * 8)


def concept_linking_head(last_hidden_state, weight, bias, *, row_tile=4096):
    """logits = last_hidden_state[:, 0, :] @ weight.T + bias (CLS pooling path).

    last_hidden_state: (N, L, H); weight: (2, H) torch layout; bias: (2,).
    Only the CLS rows are brought into VMEM; the grid over N is auto-pipelined.
    """
    n, l, h = last_hidden_state.shape
    wt = weight.T.astype(jnp.bfloat16)              # (H, 2) — MXU bf16 path
    b = bias.astype(jnp.float32).reshape(1, 2)      # (1, 2) broadcast row

    if h % 128 == 0:
        # Free row-major view; the CLS vector of row i is lanes [0, H).
        hs = last_hidden_state.reshape(n, l * h)
    else:
        # Lane-unaligned H: one-time contiguous XLA-side CLS slice.
        hs = last_hidden_state[:, 0, :]

    tn = _choose_row_tile(n, row_tile)
    grid = (pl.cdiv(n, tn),)

    in_bytes = n * h * hs.dtype.itemsize
    return pl.pallas_call(
        _head_kernel,
        out_shape=jax.ShapeDtypeStruct((n, 2), jnp.float32),
        grid=grid,
        in_specs=[
            pl.BlockSpec((tn, h), lambda i: (i, 0)),   # CLS rows only
            pl.BlockSpec((h, 2), lambda i: (0, 0)),    # weight (resident)
            pl.BlockSpec((1, 2), lambda i: (0, 0)),    # bias (resident)
        ],
        out_specs=pl.BlockSpec((tn, 2), lambda i: (i, 0)),
        compiler_params=pltpu.CompilerParams(
            dimension_semantics=("parallel",),  # shard row blocks across TCs (v7x)
        ),
        cost_estimate=pl.CostEstimate(
            flops=2 * n * h * 2,
            transcendentals=0,
            bytes_accessed=in_bytes + h * 2 * wt.dtype.itemsize + n * 2 * 4 + 8,
        ),
    )(hs, wt, b)


def synthetic_lm_last_hidden(input_ids, attention_mask, emb_table):
    """Deterministic stand-in for AutoModel(...)[0] -> (N, L, H).

    Plain-JAX glue: bf16 embedding lookup masked by attention_mask.
    """
    hid = emb_table[input_ids]                                   # (N, L, H) bf16
    return hid * attention_mask[..., None].astype(hid.dtype)


def forward(tokens, params):
    last_hidden = synthetic_lm_last_hidden(
        tokens["input_ids"], tokens["attention_mask"], params["emb_table"]
    )
    return concept_linking_head(last_hidden, params["nn_weight"], params["nn_bias"])


def _reference_logits(tokens, params):
    """Pure-JAX reference with the same (bf16-input, f32-accumulate) precision."""
    hid = synthetic_lm_last_hidden(
        tokens["input_ids"], tokens["attention_mask"], params["emb_table"]
    )
    cls_f32 = hid[:, 0, :].astype(jnp.float32)                           # (N, H)
    wt_f32 = params["nn_weight"].T.astype(jnp.bfloat16).astype(jnp.float32)
    return cls_f32 @ wt_f32 + params["nn_bias"].astype(jnp.float32)


def _make_inputs(key, num_node, max_len, emb_size, vocab):
    k_ids, k_emb, k_w, k_b = jax.random.split(key, 4)
    input_ids = jax.random.randint(k_ids, (num_node, max_len), 0, vocab, dtype=jnp.int32)
    attention_mask = jnp.ones((num_node, max_len), dtype=jnp.int32)
    tokens = {"input_ids": input_ids, "attention_mask": attention_mask}
    bound = 1.0 / (emb_size ** 0.5)
    params = {
        "emb_table": (jax.random.normal(k_emb, (vocab, emb_size), dtype=jnp.float32)
                      * 0.02).astype(jnp.bfloat16),
        "nn_weight": jax.random.uniform(k_w, (2, emb_size), jnp.float32, -bound, bound),
        "nn_bias":   jax.random.uniform(k_b, (2,), jnp.float32, -bound, bound),
    }
    return tokens, params


if __name__ == "__main__":
    # Shapes consistent with the module's forward:
    #   num_node (batch), max_length (seq), emb_size (hidden) — kept small.
    MAX_LEN, EMB_SIZE, VOCAB = 8, 128, 64
    key = jax.random.PRNGKey(0)
    k1, k2 = jax.random.split(key)

    # Case 1: tiny batch (single grid block).
    tokens, params = _make_inputs(k1, 8, MAX_LEN, EMB_SIZE, VOCAB)
    logits = forward(tokens, params)
    jax.block_until_ready(logits)
    ref = _reference_logits(tokens, params)
    assert logits.shape == (8, 2)
    assert jnp.allclose(logits, ref, atol=1e-4, rtol=1e-4)

    # Case 2: larger batch (multi-block grid -> exercises the v7x-aware split).
    tokens2, params2 = _make_inputs(k2, 64, MAX_LEN, EMB_SIZE, VOCAB)
    logits2 = forward(tokens2, params2)
    jax.block_until_ready(logits2)
    ref2 = _reference_logits(tokens2, params2)
    assert logits2.shape == (64, 2)
    assert jnp.allclose(logits2, ref2, atol=1e-4, rtol=1e-4)

    print("KERNEL_OK")
</pallas_src>

<mosaic_0001>
module attributes {stable_mosaic.version = 11 : i64} {
  func.func @_head_kernel(%arg0: i32, %arg1: memref<8x128xbf16, #tpu.memory_space<vmem>>, %arg2: memref<128x2xbf16, #tpu.memory_space<vmem>>, %arg3: memref<1x2xf32, #tpu.memory_space<vmem>>, %arg4: memref<8x2xf32, #tpu.memory_space<vmem>>) attributes {dimension_semantics = [#tpu.dimension_semantics<parallel>], iteration_bounds = array<i64: 1>, scalar_prefetch = 0 : i64, scratch_operands = 0 : i64, tpu.core_type = #tpu.core_type<tc>, window_params = [{transform_indices = @transform_0, window_bounds = array<i64: 8, 128>}, {pipeline_mode = #tpu.pipeline_mode<synchronous>, transform_indices = @transform_1, window_bounds = array<i64: 128, 2>}, {pipeline_mode = #tpu.pipeline_mode<synchronous>, transform_indices = @transform_2, window_bounds = array<i64: 1, 2>}, {transform_indices = @transform_3, window_bounds = array<i64: 8, 2>}]} {
    %c0 = arith.constant 0 : index
    %c0_0 = arith.constant 0 : index
    %0 = vector.load %arg1[%c0, %c0_0] : memref<8x128xbf16, #tpu.memory_space<vmem>>, vector<8x128xbf16>
    %c0_1 = arith.constant 0 : index
    %c0_2 = arith.constant 0 : index
    %1 = vector.load %arg2[%c0_1, %c0_2] : memref<128x2xbf16, #tpu.memory_space<vmem>>, vector<128x2xbf16>
    %cst = arith.constant dense<0.000000e+00> : vector<8x2xf32>
    %2 = tpu.matmul %0, %1, %cst {dimension_numbers = #tpu.dot_dimension_numbers<[1], [0], [0], [1], [0, 0, 1, 1], [], []>} : vector<8x128xbf16>, vector<128x2xbf16>, vector<8x2xf32> -> vector<8x2xf32>
    %c0_3 = arith.constant 0 : index
    %c0_4 = arith.constant 0 : index
    %3 = vector.load %arg3[%c0_3, %c0_4] : memref<1x2xf32, #tpu.memory_space<vmem>>, vector<1x2xf32>
    %4 = vector.broadcast %3 : vector<1x2xf32> to vector<8x2xf32>
    %5 = arith.addf %2, %4 : vector<8x2xf32>
    %c0_5 = arith.constant 0 : index
    %c0_6 = arith.constant 0 : index
    %6 = vector.load %arg4[%c0_5, %c0_6] : memref<8x2xf32, #tpu.memory_space<vmem>>, vector<8x2xf32>
    tpu.vector_store %arg4[%c0_5, %c0_6], %5 {strides = array<i32>} : memref<8x2xf32, #tpu.memory_space<vmem>>, vector<8x2xf32>,
    return
  }
  func.func @transform_0(%arg0: i32) -> (i32, i32) {
    %c0_i32 = arith.constant 0 : i32
    %c0_i32_0 = arith.constant 0 : i32
    return %arg0, %c0_i32 : i32, i32
  }
  func.func @transform_1(%arg0: i32) -> (i32, i32) {
    %c0_i32 = arith.constant 0 : i32
    %c0_i32_0 = arith.constant 0 : i32
    %c0_i32_1 = arith.constant 0 : i32
    return %c0_i32, %c0_i32_0 : i32, i32
  }
  func.func @transform_2(%arg0: i32) -> (i32, i32) {
    %c0_i32 = arith.constant 0 : i32
    %c0_i32_0 = arith.constant 0 : i32
    %c0_i32_1 = arith.constant 0 : i32
    return %c0_i32, %c0_i32_0 : i32, i32
  }
  func.func @transform_3(%arg0: i32) -> (i32, i32) {
    %c0_i32 = arith.constant 0 : i32
    %c0_i32_0 = arith.constant 0 : i32
    return %arg0, %c0_i32 : i32, i32
  }
}

</mosaic_0001>

<llo_original>
// kernel: tpu_custom_call.1
$region0: #{tpu_custom_call.1}
  #allocation0 [shape = 'u32[]', space=smem, size = 0x4, offset = 0x4, fixed_abs, tag = 'smem constant byte address 0x4 - core index']
  #allocation1 [shape = 'u32[144,128]{1,0:T(1,128)}', space=vmem, size = 0x12000, scoped, tag = 'internal scratch']
  %s0 = inlined_call_operand.vmem [shape: bf16[8,1024], index: 0, kind: input, shape index: {}]
  %s1 = inlined_call_operand.vmem [shape: bf16[128,2], index: 1, kind: input, shape index: {}]
  %s2 = inlined_call_operand.vmem [shape: f32[1,2], index: 2, kind: input, shape index: {}]
  %s3 = inlined_call_operand.vmem [shape: f32[8,2], index: 3, kind: output, shape index: {}]
  %s4 = sld [smem:[#allocation0]]
  $region22: #{tpu_custom_call.1} parent=0
    _
  %s6 = ssub.s32 1, %s4
  %s7 = scalar_select 0, %s6, %s4
  // Predicated region
  $region2: #{tpu_custom_call.1} parent=0 // pred_check
    _
  $region3: #{tpu_custom_call.1} parent=0 // pred_check_branch
    %9 = sbr.rel (0) target = $region5
  $region4: #{tpu_custom_call.1} parent=0 // pred_region
    _
  $region5: #{tpu_custom_call.1} parent=0 // pred_fallthru
    _
  // Predicated region
  $region6: #{tpu_custom_call.1} parent=0 // pred_check
    _
  $region7: #{tpu_custom_call.1} parent=0 // pred_check_branch
    %11 = sbr.rel (0) target = $region9
  $region8: #{tpu_custom_call.1} parent=0 // pred_region
    _
  $region9: #{tpu_custom_call.1} parent=0 // pred_fallthru
    _
  // Predicated region
  $region10: #{tpu_custom_call.1} parent=0 // pred_check
    _
  $region11: #{tpu_custom_call.1} parent=0 // pred_check_branch
    %13 = sbr.rel (0) target = $region13
  $region12: #{tpu_custom_call.1} parent=0 // pred_region
    _
  $region13: #{tpu_custom_call.1} parent=0 // pred_fallthru
    _
  %v15 = vld [vmem:[%s0] sm:$0xf]
  %v16 = vld [vmem:[%s1] sm:$0xf]
  %v17 = vld [vmem:[%s1 + $0x4] sm:$0xf]
  %v18 = vld [vmem:[%s1 + $0x8] sm:$0xf]
  %v19 = vld [vmem:[%s1 + $0xc] sm:$0xf]
  %v20 = vld [vmem:[%s1 + $0x10] sm:$0xf]
  %v21 = vld [vmem:[%s1 + $0x14] sm:$0xf]
  %v22 = vld [vmem:[%s1 + $0x18] sm:$0xf]
  %v23 = vld [vmem:[%s1 + $0x1c] sm:$0xf]
  %v24 = vld [vmem:[%s1 + $0x20] sm:$0xf]
  %v25 = vld [vmem:[%s1 + $0x24] sm:$0xf]
  %v26 = vld [vmem:[%s1 + $0x28] sm:$0xf]
  %v27 = vld [vmem:[%s1 + $0x2c] sm:$0xf]
  %v28 = vld [vmem:[%s1 + $0x30] sm:$0xf]
  %v29 = vld [vmem:[%s1 + $0x34] sm:$0xf]
  %v30 = vld [vmem:[%s1 + $0x38] sm:$0xf]
  %v31 = vld [vmem:[%s1 + $0x3c] sm:$0xf]
  %v32 = vld [vmem:[%s2] sm:$0x1]
  %v34 = vlaneseq
  %v35 = vshrl.u32 %v34, 7
  %v36 = vsub.s32 0, %v35
  %v37 = vrot.slane %v32, %v36
  %v55 = vunpack.c.l.b16 %v16
  %v56 = vunpack.c.l.b16 %v17
  %v57 = vunpack.c.l.b16 %v18
  %v58 = vunpack.c.l.b16 %v19
  %v59 = vunpack.c.l.b16 %v20
  %v60 = vunpack.c.l.b16 %v21
  %v61 = vunpack.c.l.b16 %v22
  %v62 = vunpack.c.l.b16 %v23
  %v63 = vunpack.c.l.b16 %v24
  %v64 = vunpack.c.l.b16 %v25
  %v65 = vunpack.c.l.b16 %v26
  %v66 = vunpack.c.l.b16 %v27
  %v67 = vunpack.c.l.b16 %v28
  %v68 = vunpack.c.l.b16 %v29
  %v69 = vunpack.c.l.b16 %v30
  %v70 = vunpack.c.l.b16 %v31
  %v71 = vpack.c.b16 %v56, %v55
  %v72 = vpack.c.b16 %v58, %v57
  %v73 = vpack.c.b16 %v60, %v59
  %v74 = vpack.c.b16 %v62, %v61
  %v75 = vpack.c.b16 %v64, %v63
  %v76 = vpack.c.b16 %v66, %v65
  %v77 = vpack.c.b16 %v68, %v67
  %v78 = vpack.c.b16 %v70, %v69
  %87 = vmatprep.subr.bf16.mxu0 0
  %88 = vmatpush1.bf16.msra.mxu0 %v78
  %89 = vmatprep.subr.bf16.mxu0 0
  %90 = vmatpush1.bf16.msra.mxu0 %v77
  %91 = vmatprep.subr.bf16.mxu0 0
  %92 = vmatpush1.bf16.msra.mxu0 %v76
  %93 = vmatprep.subr.bf16.mxu0 0
  %94 = vmatpush1.bf16.msra.mxu0 %v75
  %95 = vmatprep.subr.bf16.mxu0 0
  %96 = vmatpush1.bf16.msra.mxu0 %v74
  %97 = vmatprep.subr.bf16.mxu0 0
  %98 = vmatpush1.bf16.msra.mxu0 %v73
  %99 = vmatprep.subr.bf16.mxu0 0
  %100 = vmatpush1.bf16.msra.mxu0 %v72
  %101 = vmatprep.subr.bf16.mxu0 0
  %102 = vmatpush1.bf16.msra.mxu0 %v71
  %103 = vmatprep.subr.bf16.mxu0 0
  %104 = vmatpush2.bf16.msra.mxu0 0
  %105 = vmatprep.subr.bf16.mxu0 0
  %106 = vmatpush2.bf16.msra.mxu0 0
  %107 = vmatprep.subr.bf16.mxu0 0
  %108 = vmatpush2.bf16.msra.mxu0 0
  %109 = vmatprep.subr.bf16.mxu0 0
  %110 = vmatpush2.bf16.msra.mxu0 0
  %111 = vmatprep.subr.bf16.mxu0 0
  %112 = vmatpush2.bf16.msra.mxu0 0
  %113 = vmatprep.subr.bf16.mxu0 0
  %114 = vmatpush2.bf16.msra.mxu0 0
  %115 = vmatprep.subr.bf16.mxu0 0
  %116 = vmatpush2.bf16.msra.mxu0 0
  %117 = vmatprep.subr.bf16.mxu0 0
  %118 = vmatpush2.bf16.msra.mxu0 0
  %119 = vmatprep.mubr.bf16.mxu0 0
  %120 = vmatmul.mubr.bf16.gmra.mxu0 %v15
  %v121 = vpop.f32.mrf.mxu0
  %v122 = vadd.f32 %v37, %v121
  %v123 = vpop.f32.mrf.mxu0
  %v124 = vpop.f32.mrf.mxu0
  %v125 = vpop.f32.mrf.mxu0
  %126 = vdwg.mxu0
  %vm127 = vcmask 15360
  %128 = vst.msk [vmem:[%s3] sm:$0xff] %vm127, %v122
  // Predicated region
  $region14: #{tpu_custom_call.1} parent=0 // pred_check
    _
  $region15: #{tpu_custom_call.1} parent=0 // pred_check_branch
    %130 = sbr.rel (0) target = $region17
  $region16: #{tpu_custom_call.1} parent=0 // pred_region
    _
  $region17: #{tpu_custom_call.1} parent=0 // pred_fallthru
    _
  // Predicated region
  $region18: #{tpu_custom_call.1} parent=0 // pred_check
    _
  $region19: #{tpu_custom_call.1} parent=0 // pred_check_branch
    %132 = sbr.rel (0) target = $region21
  $region20: #{tpu_custom_call.1} parent=0 // pred_region
    _
  $region21: #{tpu_custom_call.1} parent=0 // pred_fallthru
    _

</llo_original>
